<compile_context>
chip_gen: v7x
topology: tpu7x:2x2x1
jax: 0.10.0
libtpu: 0.0.40
codegen_flags: <defaults>
</compile_context>

<pallas_src>
import jax
import jax.numpy as jnp
from jax.experimental import pallas as pl
from jax.experimental.pallas import tpu as pltpu

# ---- model hyper-parameters (match FCNet defaults) --------------------------
NUM_INS = 3
NUM_OUTS = 3
NUM_LAYERS = 10          # number of hidden layers
HIDDEN = 50
DEPTH = NUM_LAYERS + 1   # 11 linear layers

# ---- TPU layout constants ----------------------------------------------------
FEAT_PAD = 128           # lane dimension (hidden features zero-padded to 128)
SUBLANE = 8
DEFAULT_TM = 1024        # batch tile (rows per grid step)


def _round_up(n, m):
    return ((n + m - 1) // m) * m


def fcnet_kernel(x_ref, w_ref, b_ref, o_ref):
    """One batch tile of the full 11-layer MLP.

    x_ref: (TM, NUM_INS)        lane-narrow input tile (no 42x HBM padding)
    w_ref: (DEPTH, 128, 128)    zero-padded weights, (in, out) layout,
                                constant index_map -> resident in VMEM
    b_ref: (DEPTH, 1, 128)      zero-padded biases (f32)
    o_ref: (TM, 128)            lane-dense output tile; real outputs in [:, :3]
    """
    x0 = x_ref[...].astype(jnp.float32)                      # (TM, 3)

    # Layer 0 (fan-in 3): three rank-1 VPU updates instead of a K=3 MXU matmul.
    h = x0[:, 0:1] * w_ref[0, 0:1, :].astype(jnp.float32)    # (TM,1)*(1,128)
    for j in range(1, NUM_INS):
        h = h + x0[:, j:j + 1] * w_ref[0, j:j + 1, :].astype(jnp.float32)
    h = jnp.tanh(h + b_ref[0])                               # single EUP op

    # Layers 1..DEPTH-1: 128x128 MXU matmuls with f32 accumulation.
    for i in range(1, DEPTH):
        w = w_ref[i]                                          # (128, 128)
        h = jnp.dot(h.astype(w.dtype), w, preferred_element_type=jnp.float32)
        h = h + b_ref[i]
        if i < DEPTH - 1:
            h = jnp.tanh(h)

    o_ref[...] = h.astype(o_ref.dtype)


def init_params(key):
    """Deterministic params matching torch.nn.Linear default init.

    Weights stored pre-transposed as (in, out), zero-padded to (128, 128).
    """
    layers = [NUM_INS] + [HIDDEN] * NUM_LAYERS + [NUM_OUTS]
    w_pad = jnp.zeros((DEPTH, FEAT_PAD, FEAT_PAD), jnp.float32)
    b_pad = jnp.zeros((DEPTH, 1, FEAT_PAD), jnp.float32)
    for i in range(DEPTH):
        fan_in, fan_out = layers[i], layers[i + 1]
        key, kw, kb = jax.random.split(key, 3)
        bound = 1.0 / jnp.sqrt(jnp.float32(fan_in))
        w = jax.random.uniform(kw, (fan_in, fan_out), jnp.float32, -bound, bound)
        b = jax.random.uniform(kb, (fan_out,), jnp.float32, -bound, bound)
        w_pad = w_pad.at[i, :fan_in, :fan_out].set(w)
        b_pad = b_pad.at[i, 0, :fan_out].set(b)
    return w_pad, b_pad


def fcnet_forward(x, w_pad, b_pad, *, compute_dtype=jnp.float32, tm=DEFAULT_TM):
    """x: (..., NUM_INS) -> (..., NUM_OUTS) float32 (leading dims are batch)."""
    lead_shape = x.shape[:-1]
    x2 = x.reshape(-1, NUM_INS)
    batch = x2.shape[0]

    tm = min(tm, _round_up(max(batch, 1), SUBLANE))   # don't over-tile tiny batches
    bp = _round_up(batch, tm)
    grid = (bp // tm,)

    # Only pad batch rows; lane (feature) padding never touches HBM.
    x_p = jnp.zeros((bp, NUM_INS), jnp.float32).at[:batch].set(
        x2.astype(jnp.float32))
    w_in = w_pad.astype(compute_dtype)   # bf16 halves weight VMEM + doubles MXU rate
    b_in = b_pad.astype(jnp.float32)     # bias add / tanh stay f32

    out_pad = pl.pallas_call(
        fcnet_kernel,
        out_shape=jax.ShapeDtypeStruct((bp, FEAT_PAD), jnp.float32),
        grid=grid,
        in_specs=[
            pl.BlockSpec((tm, NUM_INS), lambda i: (i, 0)),
            # Constant index maps: fetched once, resident across batch tiles.
            pl.BlockSpec((DEPTH, FEAT_PAD, FEAT_PAD), lambda i: (0, 0, 0)),
            pl.BlockSpec((DEPTH, 1, FEAT_PAD), lambda i: (0, 0, 0)),
        ],
        out_specs=pl.BlockSpec((tm, FEAT_PAD), lambda i: (i, 0)),
        compiler_params=pltpu.CompilerParams(
            # Batch tiles are independent -> v7x shards them across both
            # TensorCores; harmless no-op on single-TC v5e/v6e.
            dimension_semantics=("parallel",),
            vmem_limit_bytes=32 * 1024 * 1024,
        ),
    )(x_p, w_in, b_in)

    out = out_pad[:batch, :NUM_OUTS]
    return out.reshape(*lead_shape, NUM_OUTS)


def fcnet_reference(x, w_pad, b_pad):
    """Plain-JAX f32 reference with the same (unpadded) semantics."""
    layers = [NUM_INS] + [HIDDEN] * NUM_LAYERS + [NUM_OUTS]
    h = x.astype(jnp.float32)
    for i in range(DEPTH):
        fan_in, fan_out = layers[i], layers[i + 1]
        w = w_pad[i, :fan_in, :fan_out]
        b = b_pad[i, 0, :fan_out]
        h = h @ w + b
        if i < DEPTH - 1:
            h = jnp.tanh(h)
    return h


if __name__ == "__main__":
    key = jax.random.PRNGKey(0)
    kp, kx1, kx2 = jax.random.split(key, 3)
    w_pad, b_pad = init_params(kp)

    # Small shape consistent with the module (batch=2, 3 input features).
    x_small = jax.random.normal(kx1, (2, NUM_INS), jnp.float32)
    out_small = jax.block_until_ready(fcnet_forward(x_small, w_pad, b_pad))
    ref_small = fcnet_reference(x_small, w_pad, b_pad)
    assert out_small.shape == (2, NUM_OUTS)
    assert jnp.allclose(out_small, ref_small, atol=1e-5, rtol=1e-5)

    # Multi-tile path: exercises batch tiling + padded last tile.
    x_big = jax.random.normal(kx2, (2500, NUM_INS), jnp.float32)
    out_big = jax.block_until_ready(fcnet_forward(x_big, w_pad, b_pad))
    ref_big = fcnet_reference(x_big, w_pad, b_pad)
    assert out_big.shape == (2500, NUM_OUTS)
    assert jnp.allclose(out_big, ref_big, atol=1e-5, rtol=1e-5)

    # bf16 weights/activations (v6e/v7x MXU path), f32 accumulation -> looser tol.
    out_bf16 = jax.block_until_ready(
        fcnet_forward(x_big, w_pad, b_pad, compute_dtype=jnp.bfloat16))
    assert jnp.allclose(out_bf16, ref_big, atol=5e-2, rtol=5e-2)

    print("KERNEL_OK")
</pallas_src>

<mosaic_0001>
module attributes {stable_mosaic.version = 11 : i64} {
  func.func @fcnet_kernel(%arg0: i32, %arg1: memref<8x3xf32, #tpu.memory_space<vmem>>, %arg2: memref<11x128x128xf32, #tpu.memory_space<vmem>>, %arg3: memref<11x1x128xf32, #tpu.memory_space<vmem>>, %arg4: memref<8x128xf32, #tpu.memory_space<vmem>>) attributes {dimension_semantics = [#tpu.dimension_semantics<parallel>], iteration_bounds = array<i64: 1>, scalar_prefetch = 0 : i64, scratch_operands = 0 : i64, tpu.core_type = #tpu.core_type<tc>, window_params = [{transform_indices = @transform_0, window_bounds = array<i64: 8, 3>}, {pipeline_mode = #tpu.pipeline_mode<synchronous>, transform_indices = @transform_1, window_bounds = array<i64: 11, 128, 128>}, {pipeline_mode = #tpu.pipeline_mode<synchronous>, transform_indices = @transform_2, window_bounds = array<i64: 11, 1, 128>}, {transform_indices = @transform_3, window_bounds = array<i64: 8, 128>}]} {
    %c0 = arith.constant 0 : index
    %c0_0 = arith.constant 0 : index
    %0 = vector.load %arg1[%c0, %c0_0] : memref<8x3xf32, #tpu.memory_space<vmem>>, vector<8x3xf32>
    %1 = vector.extract_strided_slice %0 {offsets = [0, 0], sizes = [8, 1], strides = [1, 1]} : vector<8x3xf32> to vector<8x1xf32>
    %c0_1 = arith.constant 0 : index
    %c0_2 = arith.constant 0 : index
    %c0_3 = arith.constant 0 : index
    %2 = vector.load %arg2[%c0_1, %c0_2, %c0_3] : memref<11x128x128xf32, #tpu.memory_space<vmem>>, vector<1x1x128xf32>
    %3 = vector.shape_cast %2 : vector<1x1x128xf32> to vector<1x128xf32>
    %4 = vector.broadcast %1 : vector<8x1xf32> to vector<8x128xf32>
    %5 = vector.broadcast %3 : vector<1x128xf32> to vector<8x128xf32>
    %6 = arith.mulf %4, %5 : vector<8x128xf32>
    %7 = vector.extract_strided_slice %0 {offsets = [0, 1], sizes = [8, 1], strides = [1, 1]} : vector<8x3xf32> to vector<8x1xf32>
    %c0_4 = arith.constant 0 : index
    %c1 = arith.constant 1 : index
    %c0_5 = arith.constant 0 : index
    %8 = vector.load %arg2[%c0_4, %c1, %c0_5] : memref<11x128x128xf32, #tpu.memory_space<vmem>>, vector<1x1x128xf32>
    %9 = vector.shape_cast %8 : vector<1x1x128xf32> to vector<1x128xf32>
    %10 = vector.broadcast %7 : vector<8x1xf32> to vector<8x128xf32>
    %11 = vector.broadcast %9 : vector<1x128xf32> to vector<8x128xf32>
    %12 = arith.mulf %10, %11 : vector<8x128xf32>
    %13 = arith.addf %6, %12 : vector<8x128xf32>
    %14 = vector.extract_strided_slice %0 {offsets = [0, 2], sizes = [8, 1], strides = [1, 1]} : vector<8x3xf32> to vector<8x1xf32>
    %c0_6 = arith.constant 0 : index
    %c2 = arith.constant 2 : index
    %c0_7 = arith.constant 0 : index
    %15 = vector.load %arg2[%c0_6, %c2, %c0_7] : memref<11x128x128xf32, #tpu.memory_space<vmem>>, vector<1x1x128xf32>
    %16 = vector.shape_cast %15 : vector<1x1x128xf32> to vector<1x128xf32>
    %17 = vector.broadcast %14 : vector<8x1xf32> to vector<8x128xf32>
    %18 = vector.broadcast %16 : vector<1x128xf32> to vector<8x128xf32>
    %19 = arith.mulf %17, %18 : vector<8x128xf32>
    %20 = arith.addf %13, %19 : vector<8x128xf32>
    %c0_8 = arith.constant 0 : index
    %c0_9 = arith.constant 0 : index
    %c0_10 = arith.constant 0 : index
    %21 = vector.load %arg3[%c0_8, %c0_9, %c0_10] : memref<11x1x128xf32, #tpu.memory_space<vmem>>, vector<1x1x128xf32>
    %22 = vector.shape_cast %21 : vector<1x1x128xf32> to vector<1x128xf32>
    %23 = vector.broadcast %22 : vector<1x128xf32> to vector<8x128xf32>
    %24 = arith.addf %20, %23 : vector<8x128xf32>
    %25 = math.tanh %24 : vector<8x128xf32>
    %c1_11 = arith.constant 1 : index
    %c0_12 = arith.constant 0 : index
    %c0_13 = arith.constant 0 : index
    %26 = vector.load %arg2[%c1_11, %c0_12, %c0_13] : memref<11x128x128xf32, #tpu.memory_space<vmem>>, vector<1x128x128xf32>
    %27 = vector.shape_cast %26 : vector<1x128x128xf32> to vector<128x128xf32>
    %cst = arith.constant dense<0.000000e+00> : vector<8x128xf32>
    %28 = tpu.matmul %25, %27, %cst {dimension_numbers = #tpu.dot_dimension_numbers<[1], [0], [0], [1], [0, 0, 1, 1], [], []>} : vector<8x128xf32>, vector<128x128xf32>, vector<8x128xf32> -> vector<8x128xf32>
    %c1_14 = arith.constant 1 : index
    %c0_15 = arith.constant 0 : index
    %c0_16 = arith.constant 0 : index
    %29 = vector.load %arg3[%c1_14, %c0_15, %c0_16] : memref<11x1x128xf32, #tpu.memory_space<vmem>>, vector<1x1x128xf32>
    %30 = vector.shape_cast %29 : vector<1x1x128xf32> to vector<1x128xf32>
    %31 = vector.broadcast %30 : vector<1x128xf32> to vector<8x128xf32>
    %32 = arith.addf %28, %31 : vector<8x128xf32>
    %33 = math.tanh %32 : vector<8x128xf32>
    %c2_17 = arith.constant 2 : index
    %c0_18 = arith.constant 0 : index
    %c0_19 = arith.constant 0 : index
    %34 = vector.load %arg2[%c2_17, %c0_18, %c0_19] : memref<11x128x128xf32, #tpu.memory_space<vmem>>, vector<1x128x128xf32>
    %35 = vector.shape_cast %34 : vector<1x128x128xf32> to vector<128x128xf32>
    %cst_20 = arith.constant dense<0.000000e+00> : vector<8x128xf32>
    %36 = tpu.matmul %33, %35, %cst_20 {dimension_numbers = #tpu.dot_dimension_numbers<[1], [0], [0], [1], [0, 0, 1, 1], [], []>} : vector<8x128xf32>, vector<128x128xf32>, vector<8x128xf32> -> vector<8x128xf32>
    %c2_21 = arith.constant 2 : index
    %c0_22 = arith.constant 0 : index
    %c0_23 = arith.constant 0 : index
    %37 = vector.load %arg3[%c2_21, %c0_22, %c0_23] : memref<11x1x128xf32, #tpu.memory_space<vmem>>, vector<1x1x128xf32>
    %38 = vector.shape_cast %37 : vector<1x1x128xf32> to vector<1x128xf32>
    %39 = vector.broadcast %38 : vector<1x128xf32> to vector<8x128xf32>
    %40 = arith.addf %36, %39 : vector<8x128xf32>
    %41 = math.tanh %40 : vector<8x128xf32>
    %c3 = arith.constant 3 : index
    %c0_24 = arith.constant 0 : index
    %c0_25 = arith.constant 0 : index
    %42 = vector.load %arg2[%c3, %c0_24, %c0_25] : memref<11x128x128xf32, #tpu.memory_space<vmem>>, vector<1x128x128xf32>
    %43 = vector.shape_cast %42 : vector<1x128x128xf32> to vector<128x128xf32>
    %cst_26 = arith.constant dense<0.000000e+00> : vector<8x128xf32>
    %44 = tpu.matmul %41, %43, %cst_26 {dimension_numbers = #tpu.dot_dimension_numbers<[1], [0], [0], [1], [0, 0, 1, 1], [], []>} : vector<8x128xf32>, vector<128x128xf32>, vector<8x128xf32> -> vector<8x128xf32>
    %c3_27 = arith.constant 3 : index
    %c0_28 = arith.constant 0 : index
    %c0_29 = arith.constant 0 : index
    %45 = vector.load %arg3[%c3_27, %c0_28, %c0_29] : memref<11x1x128xf32, #tpu.memory_space<vmem>>, vector<1x1x128xf32>
    %46 = vector.shape_cast %45 : vector<1x1x128xf32> to vector<1x128xf32>
    %47 = vector.broadcast %46 : vector<1x128xf32> to vector<8x128xf32>
    %48 = arith.addf %44, %47 : vector<8x128xf32>
    %49 = math.tanh %48 : vector<8x128xf32>
    %c4 = arith.constant 4 : index
    %c0_30 = arith.constant 0 : index
    %c0_31 = arith.constant 0 : index
    %50 = vector.load %arg2[%c4, %c0_30, %c0_31] : memref<11x128x128xf32, #tpu.memory_space<vmem>>, vector<1x128x128xf32>
    %51 = vector.shape_cast %50 : vector<1x128x128xf32> to vector<128x128xf32>
    %cst_32 = arith.constant dense<0.000000e+00> : vector<8x128xf32>
    %52 = tpu.matmul %49, %51, %cst_32 {dimension_numbers = #tpu.dot_dimension_numbers<[1], [0], [0], [1], [0, 0, 1, 1], [], []>} : vector<8x128xf32>, vector<128x128xf32>, vector<8x128xf32> -> vector<8x128xf32>
    %c4_33 = arith.constant 4 : index
    %c0_34 = arith.constant 0 : index
    %c0_35 = arith.constant 0 : index
    %53 = vector.load %arg3[%c4_33, %c0_34, %c0_35] : memref<11x1x128xf32, #tpu.memory_space<vmem>>, vector<1x1x128xf32>
    %54 = vector.shape_cast %53 : vector<1x1x128xf32> to vector<1x128xf32>
    %55 = vector.broadcast %54 : vector<1x128xf32> to vector<8x128xf32>
    %56 = arith.addf %52, %55 : vector<8x128xf32>
    %57 = math.tanh %56 : vector<8x128xf32>
    %c5 = arith.constant 5 : index
    %c0_36 = arith.constant 0 : index
    %c0_37 = arith.constant 0 : index
    %58 = vector.load %arg2[%c5, %c0_36, %c0_37] : memref<11x128x128xf32, #tpu.memory_space<vmem>>, vector<1x128x128xf32>
    %59 = vector.shape_cast %58 : vector<1x128x128xf32> to vector<128x128xf32>
    %cst_38 = arith.constant dense<0.000000e+00> : vector<8x128xf32>
    %60 = tpu.matmul %57, %59, %cst_38 {dimension_numbers = #tpu.dot_dimension_numbers<[1], [0], [0], [1], [0, 0, 1, 1], [], []>} : vector<8x128xf32>, vector<128x128xf32>, vector<8x128xf32> -> vector<8x128xf32>
    %c5_39 = arith.constant 5 : index
    %c0_40 = arith.constant 0 : index
    %c0_41 = arith.constant 0 : index
    %61 = vector.load %arg3[%c5_39, %c0_40, %c0_41] : memref<11x1x128xf32, #tpu.memory_space<vmem>>, vector<1x1x128xf32>
    %62 = vector.shape_cast %61 : vector<1x1x128xf32> to vector<1x128xf32>
    %63 = vector.broadcast %62 : vector<1x128xf32> to vector<8x128xf32>
    %64 = arith.addf %60, %63 : vector<8x128xf32>
    %65 = math.tanh %64 : vector<8x128xf32>
    %c6 = arith.constant 6 : index
    %c0_42 = arith.constant 0 : index
    %c0_43 = arith.constant 0 : index
    %66 = vector.load %arg2[%c6, %c0_42, %c0_43] : memref<11x128x128xf32, #tpu.memory_space<vmem>>, vector<1x128x128xf32>
    %67 = vector.shape_cast %66 : vector<1x128x128xf32> to vector<128x128xf32>
    %cst_44 = arith.constant dense<0.000000e+00> : vector<8x128xf32>
    %68 = tpu.matmul %65, %67, %cst_44 {dimension_numbers = #tpu.dot_dimension_numbers<[1], [0], [0], [1], [0, 0, 1, 1], [], []>} : vector<8x128xf32>, vector<128x128xf32>, vector<8x128xf32> -> vector<8x128xf32>
    %c6_45 = arith.constant 6 : index
    %c0_46 = arith.constant 0 : index
    %c0_47 = arith.constant 0 : index
    %69 = vector.load %arg3[%c6_45, %c0_46, %c0_47] : memref<11x1x128xf32, #tpu.memory_space<vmem>>, vector<1x1x128xf32>
    %70 = vector.shape_cast %69 : vector<1x1x128xf32> to vector<1x128xf32>
    %71 = vector.broadcast %70 : vector<1x128xf32> to vector<8x128xf32>
    %72 = arith.addf %68, %71 : vector<8x128xf32>
    %73 = math.tanh %72 : vector<8x128xf32>
    %c7 = arith.constant 7 : index
    %c0_48 = arith.constant 0 : index
    %c0_49 = arith.constant 0 : index
    %74 = vector.load %arg2[%c7, %c0_48, %c0_49] : memref<11x128x128xf32, #tpu.memory_space<vmem>>, vector<1x128x128xf32>
    %75 = vector.shape_cast %74 : vector<1x128x128xf32> to vector<128x128xf32>
    %cst_50 = arith.constant dense<0.000000e+00> : vector<8x128xf32>
    %76 = tpu.matmul %73, %75, %cst_50 {dimension_numbers = #tpu.dot_dimension_numbers<[1], [0], [0], [1], [0, 0, 1, 1], [], []>} : vector<8x128xf32>, vector<128x128xf32>, vector<8x128xf32> -> vector<8x128xf32>
    %c7_51 = arith.constant 7 : index
    %c0_52 = arith.constant 0 : index
    %c0_53 = arith.constant 0 : index
    %77 = vector.load %arg3[%c7_51, %c0_52, %c0_53] : memref<11x1x128xf32, #tpu.memory_space<vmem>>, vector<1x1x128xf32>
    %78 = vector.shape_cast %77 : vector<1x1x128xf32> to vector<1x128xf32>
    %79 = vector.broadcast %78 : vector<1x128xf32> to vector<8x128xf32>
    %80 = arith.addf %76, %79 : vector<8x128xf32>
    %81 = math.tanh %80 : vector<8x128xf32>
    %c8 = arith.constant 8 : index
    %c0_54 = arith.constant 0 : index
    %c0_55 = arith.constant 0 : index
    %82 = vector.load %arg2[%c8, %c0_54, %c0_55] : memref<11x128x128xf32, #tpu.memory_space<vmem>>, vector<1x128x128xf32>
    %83 = vector.shape_cast %82 : vector<1x128x128xf32> to vector<128x128xf32>
    %cst_56 = arith.constant dense<0.000000e+00> : vector<8x128xf32>
    %84 = tpu.matmul %81, %83, %cst_56 {dimension_numbers = #tpu.dot_dimension_numbers<[1], [0], [0], [1], [0, 0, 1, 1], [], []>} : vector<8x128xf32>, vector<128x128xf32>, vector<8x128xf32> -> vector<8x128xf32>
    %c8_57 = arith.constant 8 : index
    %c0_58 = arith.constant 0 : index
    %c0_59 = arith.constant 0 : index
    %85 = vector.load %arg3[%c8_57, %c0_58, %c0_59] : memref<11x1x128xf32, #tpu.memory_space<vmem>>, vector<1x1x128xf32>
    %86 = vector.shape_cast %85 : vector<1x1x128xf32> to vector<1x128xf32>
    %87 = vector.broadcast %86 : vector<1x128xf32> to vector<8x128xf32>
    %88 = arith.addf %84, %87 : vector<8x128xf32>
    %89 = math.tanh %88 : vector<8x128xf32>
    %c9 = arith.constant 9 : index
    %c0_60 = arith.constant 0 : index
    %c0_61 = arith.constant 0 : index
    %90 = vector.load %arg2[%c9, %c0_60, %c0_61] : memref<11x128x128xf32, #tpu.memory_space<vmem>>, vector<1x128x128xf32>
    %91 = vector.shape_cast %90 : vector<1x128x128xf32> to vector<128x128xf32>
    %cst_62 = arith.constant dense<0.000000e+00> : vector<8x128xf32>
    %92 = tpu.matmul %89, %91, %cst_62 {dimension_numbers = #tpu.dot_dimension_numbers<[1], [0], [0], [1], [0, 0, 1, 1], [], []>} : vector<8x128xf32>, vector<128x128xf32>, vector<8x128xf32> -> vector<8x128xf32>
    %c9_63 = arith.constant 9 : index
    %c0_64 = arith.constant 0 : index
    %c0_65 = arith.constant 0 : index
    %93 = vector.load %arg3[%c9_63, %c0_64, %c0_65] : memref<11x1x128xf32, #tpu.memory_space<vmem>>, vector<1x1x128xf32>
    %94 = vector.shape_cast %93 : vector<1x1x128xf32> to vector<1x128xf32>
    %95 = vector.broadcast %94 : vector<1x128xf32> to vector<8x128xf32>
    %96 = arith.addf %92, %95 : vector<8x128xf32>
    %97 = math.tanh %96 : vector<8x128xf32>
    %c10 = arith.constant 10 : index
    %c0_66 = arith.constant 0 : index
    %c0_67 = arith.constant 0 : index
    %98 = vector.load %arg2[%c10, %c0_66, %c0_67] : memref<11x128x128xf32, #tpu.memory_space<vmem>>, vector<1x128x128xf32>
    %99 = vector.shape_cast %98 : vector<1x128x128xf32> to vector<128x128xf32>
    %cst_68 = arith.constant dense<0.000000e+00> : vector<8x128xf32>
    %100 = tpu.matmul %97, %99, %cst_68 {dimension_numbers = #tpu.dot_dimension_numbers<[1], [0], [0], [1], [0, 0, 1, 1], [], []>} : vector<8x128xf32>, vector<128x128xf32>, vector<8x128xf32> -> vector<8x128xf32>
    %c10_69 = arith.constant 10 : index
    %c0_70 = arith.constant 0 : index
    %c0_71 = arith.constant 0 : index
    %101 = vector.load %arg3[%c10_69, %c0_70, %c0_71] : memref<11x1x128xf32, #tpu.memory_space<vmem>>, vector<1x1x128xf32>
    %102 = vector.shape_cast %101 : vector<1x1x128xf32> to vector<1x128xf32>
    %103 = vector.broadcast %102 : vector<1x128xf32> to vector<8x128xf32>
    %104 = arith.addf %100, %103 : vector<8x128xf32>
    %c0_72 = arith.constant 0 : index
    %c0_73 = arith.constant 0 : index
    %105 = vector.load %arg4[%c0_72, %c0_73] : memref<8x128xf32, #tpu.memory_space<vmem>>, vector<8x128xf32>
    tpu.vector_store %arg4[%c0_72, %c0_73], %104 {strides = array<i32>} : memref<8x128xf32, #tpu.memory_space<vmem>>, vector<8x128xf32>,
    return
  }
  func.func @transform_0(%arg0: i32) -> (i32, i32) {
    %c0_i32 = arith.constant 0 : i32
    %c0_i32_0 = arith.constant 0 : i32
    return %arg0, %c0_i32 : i32, i32
  }
  func.func @transform_1(%arg0: i32) -> (i32, i32, i32) {
    %c0_i32 = arith.constant 0 : i32
    %c0_i32_0 = arith.constant 0 : i32
    %c0_i32_1 = arith.constant 0 : i32
    %c0_i32_2 = arith.constant 0 : i32
    return %c0_i32, %c0_i32_0, %c0_i32_1 : i32, i32, i32
  }
  func.func @transform_2(%arg0: i32) -> (i32, i32, i32) {
    %c0_i32 = arith.constant 0 : i32
    %c0_i32_0 = arith.constant 0 : i32
    %c0_i32_1 = arith.constant 0 : i32
    %c0_i32_2 = arith.constant 0 : i32
    return %c0_i32, %c0_i32_0, %c0_i32_1 : i32, i32, i32
  }
  func.func @transform_3(%arg0: i32) -> (i32, i32) {
    %c0_i32 = arith.constant 0 : i32
    %c0_i32_0 = arith.constant 0 : i32
    return %arg0, %c0_i32 : i32, i32
  }
}

</mosaic_0001>

<llo_original>
// kernel: tpu_custom_call.1
$region0: #{tpu_custom_call.1}
  #allocation0 [shape = 'u32[]', space=smem, size = 0x4, offset = 0x4, fixed_abs, tag = 'smem constant byte address 0x4 - core index']
  #allocation1 [shape = 'u32[144,128]{1,0:T(1,128)}', space=vmem, size = 0x12000, scoped, tag = 'internal scratch']
  %s0 = inlined_call_operand.vmem [shape: f32[8,3], index: 0, kind: input, shape index: {}]
  %s1 = inlined_call_operand.hbm [shape: f32[11,128,128], index: 1, kind: input, shape index: {}]
  %s2 = inlined_call_operand.vmem [shape: f32[11,1,128], index: 2, kind: input, shape index: {}]
  %s3 = inlined_call_operand.hbm [shape: f32[8,128], index: 3, kind: output, shape index: {}]
  %s4 = sld [smem:[#allocation0]]
  $region26: #{tpu_custom_call.1} parent=0
    _
  %s6 = ssub.s32 1, %s4
  %s7 = scalar_select 0, %s6, %s4
  $region1: #{tpu_custom_call.1} parent=0
    #allocation2 [shape = 'u8[720896]{0}', space=vmem, size = 0xb0000, scoped, tag = 'input window, operand 1, single buffered']
    #allocation3 [shape = 's32[1]{0}', space=sflag, size = 0x4, scoped, tag = 'scoped memory for tpu_custom_call.1']
    #allocation4 [shape = 's32[1]{0}', space=sflag, size = 0x4, scoped, tag = 'scoped memory for tpu_custom_call.1']
    #allocation5 [shape = 'u8[4096]{0}', space=vmem, size = 0x1000, scoped, tag = 'output window, operand 0, single buffered']
    %8 = vsyncpa [#allocation3], 0
    %9 = vsyncpa [#allocation4], 0
    // Predicated region
    $region2: #{tpu_custom_call.1} parent=1 // pred_check
      _
    $region3: #{tpu_custom_call.1} parent=1 // pred_check_branch
      %11 = sbr.rel (0) target = $region5
    $region4: #{tpu_custom_call.1} parent=1 // pred_region
      _
    $region5: #{tpu_custom_call.1} parent=1 // pred_fallthru
      _
    // Predicated region
    $region6: #{tpu_custom_call.1} parent=1 // pred_check
      _
    $region7: #{tpu_custom_call.1} parent=1 // pred_check_branch
      %13 = sbr.rel (0) target = $region9
    $region8: #{tpu_custom_call.1} parent=1 // pred_region
      %s15 = ssub.s32 22528, 22528
      %16 = vsyncadd [#allocation3], %s15
      %s17 = sshll.u32 [#allocation2], 4
      %s18 = int_to_ptr.vmem [resolvable:$true] %s17
      %23 = dma.hbm_to_vmem [thread:$0]  %s1, 22528, %s18, [#allocation3], 128, 128, 8
    $region9: #{tpu_custom_call.1} parent=1 // pred_fallthru
      _
    // Predicated region
    $region10: #{tpu_custom_call.1} parent=1 // pred_check
      _
    $region11: #{tpu_custom_call.1} parent=1 // pred_check_branch
      %25 = sbr.rel (0) target = $region13
    $region12: #{tpu_custom_call.1} parent=1 // pred_region
      _
    $region13: #{tpu_custom_call.1} parent=1 // pred_fallthru
      _
    // Predicated region
    $region14: #{tpu_custom_call.1} parent=1 // pred_check
      _
    $region15: #{tpu_custom_call.1} parent=1 // pred_check_branch
      %27 = sbr.rel (0) target = $region17
    $region16: #{tpu_custom_call.1} parent=1 // pred_region
      %28 = dma.done [#allocation3], 22528
    $region17: #{tpu_custom_call.1} parent=1 // pred_fallthru
      _
    %v29 = vld [vmem:[%s0] sm:$0xff]
    %v30 = vld [vmem:[#allocation2] sm:$0x1]
    %32 = vset.pattern.permute.xlu0 0
    %33 = vperm.xlu0 %32, %v29
    %v34 = vpop.permute.xlu0 %33
    %v36 = vlaneseq
    %v37 = vshrl.u32 %v36, 7
    %v38 = vsub.s32 0, %v37
    %v39 = vrot.slane %v30, %v38
    %v40 = vmul.f32 %v34, %v39
    %v41 = vld [vmem:[#allocation2 + $0x1] sm:$0x1]
    %42 = vset.pattern.permute.xlu0 1
    %43 = vperm.xlu0 %42, %v29
    %v44 = vpop.permute.xlu0 %43
    %v46 = vlaneseq
    %v47 = vshrl.u32 %v46, 7
    %v48 = vsub.s32 0, %v47
    %v49 = vrot.slane %v41, %v48
    %v50 = vmul.f32 %v44, %v49
    %v51 = vadd.f32 %v40, %v50
    %v52 = vld [vmem:[#allocation2 + $0x2] sm:$0x1]
    %53 = vset.pattern.permute.xlu0 2
    %54 = vperm.xlu0 %53, %v29
    %v55 = vpop.permute.xlu0 %54
    %v57 = vlaneseq
    %v58 = vshrl.u32 %v57, 7
    %v59 = vsub.s32 0, %v58
    %v60 = vrot.slane %v52, %v59
    %v61 = vmul.f32 %v55, %v60
    %v62 = vadd.f32 %v51, %v61
    %v63 = vld [vmem:[%s2] sm:$0x1]
    %v65 = vlaneseq
    %v66 = vshrl.u32 %v65, 7
    %v67 = vsub.s32 0, %v66
    %v68 = vrot.slane %v63, %v67
    %v70 = vadd.f32 %v62, %v68
    %v71 = vtanh.pop %v70
    %s72 = scalar_lea.vmem [#allocation2], 128
    %v73 = vld [vmem:[%s72] sm:$0xff]
    %v74 = vld [vmem:[%s72 + $0x8] sm:$0xff]
    %v75 = vld [vmem:[%s72 + $0x10] sm:$0xff]
    %v76 = vld [vmem:[%s72 + $0x18] sm:$0xff]
    %v77 = vld [vmem:[%s72 + $0x20] sm:$0xff]
    %v78 = vld [vmem:[%s72 + $0x28] sm:$0xff]
    %v79 = vld [vmem:[%s72 + $0x30] sm:$0xff]
    %v80 = vld [vmem:[%s72 + $0x38] sm:$0xff]
    %v81 = vld [vmem:[%s72 + $0x40] sm:$0xff]
    %v82 = vld [vmem:[%s72 + $0x48] sm:$0xff]
    %v83 = vld [vmem:[%s72 + $0x50] sm:$0xff]
    %v84 = vld [vmem:[%s72 + $0x58] sm:$0xff]
    %v85 = vld [vmem:[%s72 + $0x60] sm:$0xff]
    %v86 = vld [vmem:[%s72 + $0x68] sm:$0xff]
    %v87 = vld [vmem:[%s72 + $0x70] sm:$0xff]
    %v88 = vld [vmem:[%s72 + $0x78] sm:$0xff]
    %s89 = scalar_lea.vmem %s2, 1
    %v90 = vld [vmem:[%s89] sm:$0x1]
    %v92 = vlaneseq
    %v93 = vshrl.u32 %v92, 7
    %v94 = vsub.s32 0, %v93
    %v95 = vrot.slane %v90, %v94
    %97 = vmatprep.subr.mxu0 0.0
    %98 = vmatpush1.msra.mxu0 %v73
    %99 = vmatprep.subr.mxu0 0.0
    %100 = vmatpush1.msra.mxu0 %v74
    %101 = vmatprep.subr.mxu0 0.0
    %102 = vmatpush1.msra.mxu0 %v75
    %103 = vmatprep.subr.mxu0 0.0
    %104 = vmatpush1.msra.mxu0 %v76
    %105 = vmatprep.subr.mxu0 0.0
    %106 = vmatpush1.msra.mxu0 %v77
    %107 = vmatprep.subr.mxu0 0.0
    %108 = vmatpush1.msra.mxu0 %v78
    %109 = vmatprep.subr.mxu0 0.0
    %110 = vmatpush1.msra.mxu0 %v79
    %111 = vmatprep.subr.mxu0 0.0
    %112 = vmatpush1.msra.mxu0 %v80
    %113 = vmatprep.subr.mxu0 0.0
    %114 = vmatpush1.msra.mxu0 %v81
    %115 = vmatprep.subr.mxu0 0.0
    %116 = vmatpush1.msra.mxu0 %v82
    %117 = vmatprep.subr.mxu0 0.0
    %118 = vmatpush1.msra.mxu0 %v83
    %119 = vmatprep.subr.mxu0 0.0
    %120 = vmatpush1.msra.mxu0 %v84
    %121 = vmatprep.subr.mxu0 0.0
    %122 = vmatpush1.msra.mxu0 %v85
    %123 = vmatprep.subr.mxu0 0.0
    %124 = vmatpush1.msra.mxu0 %v86
    %125 = vmatprep.subr.mxu0 0.0
    %126 = vmatpush1.msra.mxu0 %v87
    %127 = vmatprep.subr.mxu0 0.0
    %128 = vmatpush1.msra.mxu0 %v88
    %129 = vmatprep.subr.mxu0 0.0
    %130 = vmatpush1.msra.mxu0 0.0
    %131 = vmatprep.subr.mxu0 0.0
    %132 = vmatpush1.msra.mxu0 0.0
    %133 = vmatprep.subr.mxu0 0.0
    %134 = vmatpush1.msra.mxu0 0.0
    %135 = vmatprep.subr.mxu0 0.0
    %136 = vmatpush1.msra.mxu0 0.0
    %137 = vmatprep.subr.mxu0 0.0
    %138 = vmatpush1.msra.mxu0 0.0
    %139 = vmatprep.subr.mxu0 0.0
    %140 = vmatpush1.msra.mxu0 0.0
    %141 = vmatprep.subr.mxu0 0.0
    %142 = vmatpush1.msra.mxu0 0.0
    %143 = vmatprep.subr.mxu0 0.0
    %144 = vmatpush1.msra.mxu0 0.0
    %145 = vmatprep.subr.mxu0 0.0
    %146 = vmatpush1.msra.mxu0 0.0
    %147 = vmatprep.subr.mxu0 0.0
    %148 = vmatpush1.msra.mxu0 0.0
    %149 = vmatprep.subr.mxu0 0.0
    %150 = vmatpush1.msra.mxu0 0.0
    %151 = vmatprep.subr.mxu0 0.0
    %152 = vmatpush1.msra.mxu0 0.0
    %153 = vmatprep.subr.mxu0 0.0
    %154 = vmatpush1.msra.mxu0 0.0
    %155 = vmatprep.subr.mxu0 0.0
    %156 = vmatpush1.msra.mxu0 0.0
    %157 = vmatprep.subr.mxu0 0.0
    %158 = vmatpush1.msra.mxu0 0.0
    %159 = vmatprep.subr.mxu0 0.0
    %160 = vmatpush1.msra.mxu0 0.0
    %161 = vmatprep.mubr.f32.mxu0 0.0
    %162 = vmatmul.mubr.f32.gmra.mrb[0].mxu0 %v71
    %v163 = vpop.f32.mrb[0].mxu0
    %v164 = vadd.f32 %v95, %v163
    %v165 = vpop.f32.mrb[0].mxu0
    %166 = vdwg.mxu0
    %v167 = vtanh.pop %v164
    %s168 = scalar_lea.vmem [#allocation2], 256
    %v169 = vld [vmem:[%s168] sm:$0xff]
    %v170 = vld [vmem:[%s168 + $0x8] sm:$0xff]
    %v171 = vld [vmem:[%s168 + $0x10] sm:$0xff]
    %v172 = vld [vmem:[%s168 + $0x18] sm:$0xff]
    %v173 = vld [vmem:[%s168 + $0x20] sm:$0xff]
    %v174 = vld [vmem:[%s168 + $0x28] sm:$0xff]
    %v175 = vld [vmem:[%s168 + $0x30] sm:$0xff]
    %v176 = vld [vmem:[%s168 + $0x38] sm:$0xff]
    %v177 = vld [vmem:[%s168 + $0x40] sm:$0xff]
    %v178 = vld [vmem:[%s168 + $0x48] sm:$0xff]
    %v179 = vld [vmem:[%s168 + $0x50] sm:$0xff]
    %v180 = vld [vmem:[%s168 + $0x58] sm:$0xff]
    %v181 = vld [vmem:[%s168 + $0x60] sm:$0xff]
    %v182 = vld [vmem:[%s168 + $0x68] sm:$0xff]
    %v183 = vld [vmem:[%s168 + $0x70] sm:$0xff]
    %v184 = vld [vmem:[%s168 + $0x78] sm:$0xff]
    %s185 = scalar_lea.vmem %s2, 2
    %v186 = vld [vmem:[%s185] sm:$0x1]
    %v188 = vlaneseq
    %v189 = vshrl.u32 %v188, 7
    %v190 = vsub.s32 0, %v189
    %v191 = vrot.slane %v186, %v190
    %193 = vmatprep.subr.mxu0 0.0
    %194 = vmatpush1.msra.mxu0 %v169
    %195 = vmatprep.subr.mxu0 0.0
    %196 = vmatpush1.msra.mxu0 %v170
    %197 = vmatprep.subr.mxu0 0.0
    %198 = vmatpush1.msra.mxu0 %v171
    %199 = vmatprep.subr.mxu0 0.0
    %200 = vmatpush1.msra.mxu0 %v172
    %201 = vmatprep.subr.mxu0 0.0
    %202 = vmatpush1.msra.mxu0 %v173
    %203 = vmatprep.subr.mxu0 0.0
    %204 = vmatpush1.msra.mxu0 %v174
    %205 = vmatprep.subr.mxu0 0.0
    %206 = vmatpush1.msra.mxu0 %v175
    %207 = vmatprep.subr.mxu0 0.0
    %208 = vmatpush1.msra.mxu0 %v176
    %209 = vmatprep.subr.mxu0 0.0
    %210 = vmatpush1.msra.mxu0 %v177
    %211 = vmatprep.subr.mxu0 0.0
    %212 = vmatpush1.msra.mxu0 %v178
    %213 = vmatprep.subr.mxu0 0.0
    %214 = vmatpush1.msra.mxu0 %v179
    %215 = vmatprep.subr.mxu0 0.0
    %216 = vmatpush1.msra.mxu0 %v180
    %217 = vmatprep.subr.mxu0 0.0
    %218 = vmatpush1.msra.mxu0 %v181
    %219 = vmatprep.subr.mxu0 0.0
    %220 = vmatpush1.msra.mxu0 %v182
    %221 = vmatprep.subr.mxu0 0.0
    %222 = vmatpush1.msra.mxu0 %v183
    %223 = vmatprep.subr.mxu0 0.0
    %224 = vmatpush1.msra.mxu0 %v184
    %225 = vmatprep.subr.mxu0 0.0
    %226 = vmatpush1.msra.mxu0 0.0
    %227 = vmatprep.subr.mxu0 0.0
    %228 = vmatpush1.msra.mxu0 0.0
    %229 = vmatprep.subr.mxu0 0.0
    %230 = vmatpush1.msra.mxu0 0.0
    %231 = vmatprep.subr.mxu0 0.0
    %232 = vmatpush1.msra.mxu0 0.0
    %233 = vmatprep.subr.mxu0 0.0
    %234 = vmatpush1.msra.mxu0 0.0
    %235 = vmatprep.subr.mxu0 0.0
    %236 = vmatpush1.msra.mxu0 0.0
    %237 = vmatprep.subr.mxu0 0.0
    %238 = vmatpush1.msra.mxu0 0.0
    %239 = vmatprep.subr.mxu0 0.0
    %240 = vmatpush1.msra.mxu0 0.0
    %241 = vmatprep.subr.mxu0 0.0
    %242 = vmatpush1.msra.mxu0 0.0
    %243 = vmatprep.subr.mxu0 0.0
    %244 = vmatpush1.msra.mxu0 0.0
    %245 = vmatprep.subr.mxu0 0.0
    %246 = vmatpush1.msra.mxu0 0.0
    %247 = vmatprep.subr.mxu0 0.0
    %248 = vmatpush1.msra.mxu0 0.0
    %249 = vmatprep.subr.mxu0 0.0
    %250 = vmatpush1.msra.mxu0 0.0
    %251 = vmatprep.subr.mxu0 0.0
    %252 = vmatpush1.msra.mxu0 0.0
    %253 = vmatprep.subr.mxu0 0.0
    %254 = vmatpush1.msra.mxu0 0.0
    %255 = vmatprep.subr.mxu0 0.0
    %256 = vmatpush1.msra.mxu0 0.0
    %257 = vmatprep.mubr.f32.mxu0 0.0
    %258 = vmatmul.mubr.f32.gmra.mrb[0].mxu0 %v167
    %v259 = vpop.f32.mrb[0].mxu0
    %v260 = vadd.f32 %v191, %v259
    %v261 = vpop.f32.mrb[0].mxu0
    %262 = vdwg.mxu0
    %v263 = vtanh.pop %v260
    %s264 = scalar_lea.vmem [#allocation2], 384
    %v265 = vld [vmem:[%s264] sm:$0xff]
    %v266 = vld [vmem:[%s264 + $0x8] sm:$0xff]
    %v267 = vld [vmem:[%s264 + $0x10] sm:$0xff]
    %v268 = vld [vmem:[%s264 + $0x18] sm:$0xff]
    %v269 = vld [vmem:[%s264 + $0x20] sm:$0xff]
    %v270 = vld [vmem:[%s264 + $0x28] sm:$0xff]
    %v271 = vld [vmem:[%s264 + $0x30] sm:$0xff]
    %v272 = vld [vmem:[%s264 + $0x38] sm:$0xff]
    %v273 = vld [vmem:[%s264 + $0x40] sm:$0xff]
    %v274 = vld [vmem:[%s264 + $0x48] sm:$0xff]
    %v275 = vld [vmem:[%s264 + $0x50] sm:$0xff]
    %v276 = vld [vmem:[%s264 + $0x58] sm:$0xff]
    %v277 = vld [vmem:[%s264 + $0x60] sm:$0xff]
    %v278 = vld [vmem:[%s264 + $0x68] sm:$0xff]
    %v279 = vld [vmem:[%s264 + $0x70] sm:$0xff]
    %v280 = vld [vmem:[%s264 + $0x78] sm:$0xff]
    %s281 = scalar_lea.vmem %s2, 3
    %v282 = vld [vmem:[%s281] sm:$0x1]
    %v284 = vlaneseq
    %v285 = vshrl.u32 %v284, 7
    %v286 = vsub.s32 0, %v285
    %v287 = vrot.slane %v282, %v286
    %289 = vmatprep.subr.mxu0 0.0
    %290 = vmatpush1.msra.mxu0 %v265
    %291 = vmatprep.subr.mxu0 0.0
    %292 = vmatpush1.msra.mxu0 %v266
    %293 = vmatprep.subr.mxu0 0.0
    %294 = vmatpush1.msra.mxu0 %v267
    %295 = vmatprep.subr.mxu0 0.0
    %296 = vmatpush1.msra.mxu0 %v268
    %297 = vmatprep.subr.mxu0 0.0
    %298 = vmatpush1.msra.mxu0 %v269
    %299 = vmatprep.subr.mxu0 0.0
    %300 = vmatpush1.msra.mxu0 %v270
    %301 = vmatprep.subr.mxu0 0.0
    %302 = vmatpush1.msra.mxu0 %v271
    %303 = vmatprep.subr.mxu0 0.0
    %304 = vmatpush1.msra.mxu0 %v272
    %305 = vmatprep.subr.mxu0 0.0
    %306 = vmatpush1.msra.mxu0 %v273
    %307 = vmatprep.subr.mxu0 0.0
    %308 = vmatpush1.msra.mxu0 %v274
    %309 = vmatprep.subr.mxu0 0.0
    %310 = vmatpush1.msra.mxu0 %v275
    %311 = vmatprep.subr.mxu0 0.0
    %312 = vmatpush1.msra.mxu0 %v276
    %313 = vmatprep.subr.mxu0 0.0
    %314 = vmatpush1.msra.mxu0 %v277
    %315 = vmatprep.subr.mxu0 0.0
    %316 = vmatpush1.msra.mxu0 %v278
    %317 = vmatprep.subr.mxu0 0.0
    %318 = vmatpush1.msra.mxu0 %v279
    %319 = vmatprep.subr.mxu0 0.0
    %320 = vmatpush1.msra.mxu0 %v280
    %321 = vmatprep.subr.mxu0 0.0
    %322 = vmatpush1.msra.mxu0 0.0
    %323 = vmatprep.subr.mxu0 0.0
    %324 = vmatpush1.msra.mxu0 0.0
    %325 = vmatprep.subr.mxu0 0.0
    %326 = vmatpush1.msra.mxu0 0.0
    %327 = vmatprep.subr.mxu0 0.0
    %328 = vmatpush1.msra.mxu0 0.0
    %329 = vmatprep.subr.mxu0 0.0
    %330 = vmatpush1.msra.mxu0 0.0
    %331 = vmatprep.subr.mxu0 0.0
    %332 = vmatpush1.msra.mxu0 0.0
    %333 = vmatprep.subr.mxu0 0.0
    %334 = vmatpush1.msra.mxu0 0.0
    %335 = vmatprep.subr.mxu0 0.0
    %336 = vmatpush1.msra.mxu0 0.0
    %337 = vmatprep.subr.mxu0 0.0
    %338 = vmatpush1.msra.mxu0 0.0
    %339 = vmatprep.subr.mxu0 0.0
    %340 = vmatpush1.msra.mxu0 0.0
    %341 = vmatprep.subr.mxu0 0.0
    %342 = vmatpush1.msra.mxu0 0.0
    %343 = vmatprep.subr.mxu0 0.0
    %344 = vmatpush1.msra.mxu0 0.0
    %345 = vmatprep.subr.mxu0 0.0
    %346 = vmatpush1.msra.mxu0 0.0
    %347 = vmatprep.subr.mxu0 0.0
    %348 = vmatpush1.msra.mxu0 0.0
    %349 = vmatprep.subr.mxu0 0.0
    %350 = vmatpush1.msra.mxu0 0.0
    %351 = vmatprep.subr.mxu0 0.0
    %352 = vmatpush1.msra.mxu0 0.0
    %353 = vmatprep.mubr.f32.mxu0 0.0
    %354 = vmatmul.mubr.f32.gmra.mrb[0].mxu0 %v263
    %v355 = vpop.f32.mrb[0].mxu0
    %v356 = vadd.f32 %v287, %v355
    %v357 = vpop.f32.mrb[0].mxu0
    %358 = vdwg.mxu0
    %v359 = vtanh.pop %v356
    %s360 = scalar_lea.vmem [#allocation2], 512
    %v361 = vld [vmem:[%s360] sm:$0xff]
    %v362 = vld [vmem:[%s360 + $0x8] sm:$0xff]
    %v363 = vld [vmem:[%s360 + $0x10] sm:$0xff]
    %v364 = vld [vmem:[%s360 + $0x18] sm:$0xff]
    %v365 = vld [vmem:[%s360 + $0x20] sm:$0xff]
    %v366 = vld [vmem:[%s360 + $0x28] sm:$0xff]
    %v367 = vld [vmem:[%s360 + $0x30] sm:$0xff]
    %v368 = vld [vmem:[%s360 + $0x38] sm:$0xff]
    %v369 = vld [vmem:[%s360 + $0x40] sm:$0xff]
    %v370 = vld [vmem:[%s360 + $0x48] sm:$0xff]
    %v371 = vld [vmem:[%s360 + $0x50] sm:$0xff]
    %v372 = vld [vmem:[%s360 + $0x58] sm:$0xff]
    %v373 = vld [vmem:[%s360 + $0x60] sm:$0xff]
    %v374 = vld [vmem:[%s360 + $0x68] sm:$0xff]
    %v375 = vld [vmem:[%s360 + $0x70] sm:$0xff]
    %v376 = vld [vmem:[%s360 + $0x78] sm:$0xff]
    %s377 = scalar_lea.vmem %s2, 4
    %v378 = vld [vmem:[%s377] sm:$0x1]
    %v380 = vlaneseq
    %v381 = vshrl.u32 %v380, 7
    %v382 = vsub.s32 0, %v381
    %v383 = vrot.slane %v378, %v382
    %385 = vmatprep.subr.mxu0 0.0
    %386 = vmatpush1.msra.mxu0 %v361
    %387 = vmatprep.subr.mxu0 0.0
    %388 = vmatpush1.msra.mxu0 %v362
    %389 = vmatprep.subr.mxu0 0.0
    %390 = vmatpush1.msra.mxu0 %v363
    %391 = vmatprep.subr.mxu0 0.0
    %392 = vmatpush1.msra.mxu0 %v364
    %393 = vmatprep.subr.mxu0 0.0
    %394 = vmatpush1.msra.mxu0 %v365
    %395 = vmatprep.subr.mxu0 0.0
    %396 = vmatpush1.msra.mxu0 %v366
    %397 = vmatprep.subr.mxu0 0.0
    %398 = vmatpush1.msra.mxu0 %v367
    %399 = vmatprep.subr.mxu0 0.0
    %400 = vmatpush1.msra.mxu0 %v368
    %401 = vmatprep.subr.mxu0 0.0
    %402 = vmatpush1.msra.mxu0 %v369
    %403 = vmatprep.subr.mxu0 0.0
    %404 = vmatpush1.msra.mxu0 %v370
    %405 = vmatprep.subr.mxu0 0.0
    %406 = vmatpush1.msra.mxu0 %v371
    %407 = vmatprep.subr.mxu0 0.0
    %408 = vmatpush1.msra.mxu0 %v372
    %409 = vmatprep.subr.mxu0 0.0
    %410 = vmatpush1.msra.mxu0 %v373
    %411 = vmatprep.subr.mxu0 0.0
    %412 = vmatpush1.msra.mxu0 %v374
    %413 = vmatprep.subr.mxu0 0.0
    %414 = vmatpush1.msra.mxu0 %v375
    %415 = vmatprep.subr.mxu0 0.0
    %416 = vmatpush1.msra.mxu0 %v376
    %417 = vmatprep.subr.mxu0 0.0
    %418 = vmatpush1.msra.mxu0 0.0
    %419 = vmatprep.subr.mxu0 0.0
    %420 = vmatpush1.msra.mxu0 0.0
    %421 = vmatprep.subr.mxu0 0.0
    %422 = vmatpush1.msra.mxu0 0.0
    %423 = vmatprep.subr.mxu0 0.0
    %424 = vmatpush1.msra.mxu0 0.0
    %425 = vmatprep.subr.mxu0 0.0
    %426 = vmatpush1.msra.mxu0 0.0
    %427 = vmatprep.subr.mxu0 0.0
    %428 = vmatpush1.msra.mxu0 0.0
    %429 = vmatprep.subr.mxu0 0.0
    %430 = vmatpush1.msra.mxu0 0.0
    %431 = vmatprep.subr.mxu0 0.0
    %432 = vmatpush1.msra.mxu0 0.0
    %433 = vmatprep.subr.mxu0 0.0
    %434 = vmatpush1.msra.mxu0 0.0
    %435 = vmatprep.subr.mxu0 0.0
    %436 = vmatpush1.msra.mxu0 0.0
    %437 = vmatprep.subr.mxu0 0.0
    %438 = vmatpush1.msra.mxu0 0.0
    %439 = vmatprep.subr.mxu0 0.0
    %440 = vmatpush1.msra.mxu0 0.0
    %441 = vmatprep.subr.mxu0 0.0
    %442 = vmatpush1.msra.mxu0 0.0
    %443 = vmatprep.subr.mxu0 0.0
    %444 = vmatpush1.msra.mxu0 0.0
    %445 = vmatprep.subr.mxu0 0.0
    %446 = vmatpush1.msra.mxu0 0.0
    %447 = vmatprep.subr.mxu0 0.0
    %448 = vmatpush1.msra.mxu0 0.0
    %449 = vmatprep.mubr.f32.mxu0 0.0
    %450 = vmatmul.mubr.f32.gmra.mrb[0].mxu0 %v359
    %v451 = vpop.f32.mrb[0].mxu0
    %v452 = vadd.f32 %v383, %v451
    %v453 = vpop.f32.mrb[0].mxu0
    %454 = vdwg.mxu0
    %v455 = vtanh.pop %v452
    %s456 = scalar_lea.vmem [#allocation2], 640
    %v457 = vld [vmem:[%s456] sm:$0xff]
    %v458 = vld [vmem:[%s456 + $0x8] sm:$0xff]
    %v459 = vld [vmem:[%s456 + $0x10] sm:$0xff]
    %v460 = vld [vmem:[%s456 + $0x18] sm:$0xff]
    %v461 = vld [vmem:[%s456 + $0x20] sm:$0xff]
    %v462 = vld [vmem:[%s456 + $0x28] sm:$0xff]
    %v463 = vld [vmem:[%s456 + $0x30] sm:$0xff]
    %v464 = vld [vmem:[%s456 + $0x38] sm:$0xff]
    %v465 = vld [vmem:[%s456 + $0x40] sm:$0xff]
    %v466 = vld [vmem:[%s456 + $0x48] sm:$0xff]
    %v467 = vld [vmem:[%s456 + $0x50] sm:$0xff]
    %v468 = vld [vmem:[%s456 + $0x58] sm:$0xff]
    %v469 = vld [vmem:[%s456 + $0x60] sm:$0xff]
    %v470 = vld [vmem:[%s456 + $0x68] sm:$0xff]
    %v471 = vld [vmem:[%s456 + $0x70] sm:$0xff]
    %v472 = vld [vmem:[%s456 + $0x78] sm:$0xff]
    %s473 = scalar_lea.vmem %s2, 5
    %v474 = vld [vmem:[%s473] sm:$0x1]
    %v476 = vlaneseq
    %v477 = vshrl.u32 %v476, 7
    %v478 = vsub.s32 0, %v477
    %v479 = vrot.slane %v474, %v478
    %481 = vmatprep.subr.mxu0 0.0
    %482 = vmatpush1.msra.mxu0 %v457
    %483 = vmatprep.subr.mxu0 0.0
    %484 = vmatpush1.msra.mxu0 %v458
    %485 = vmatprep.subr.mxu0 0.0
    %486 = vmatpush1.msra.mxu0 %v459
    %487 = vmatprep.subr.mxu0 0.0
    %488 = vmatpush1.msra.mxu0 %v460
    %489 = vmatprep.subr.mxu0 0.0
    %490 = vmatpush1.msra.mxu0 %v461
    %491 = vmatprep.subr.mxu0 0.0
    %492 = vmatpush1.msra.mxu0 %v462
    %493 = vmatprep.subr.mxu0 0.0
    %494 = vmatpush1.msra.mxu0 %v463
    %495 = vmatprep.subr.mxu0 0.0
    %496 = vmatpush1.msra.mxu0 %v464
    %497 = vmatprep.subr.mxu0 0.0
    %498 = vmatpush1.msra.mxu0 %v465
    %499 = vmatprep.subr.mxu0 0.0
    %500 = vmatpush1.msra.mxu0 %v466
    %501 = vmatprep.subr.mxu0 0.0
    %502 = vmatpush1.msra.mxu0 %v467
    %503 = vmatprep.subr.mxu0 0.0
    %504 = vmatpush1.msra.mxu0 %v468
    %505 = vmatprep.subr.mxu0 0.0
    %506 = vmatpush1.msra.mxu0 %v469
    %507 = vmatprep.subr.mxu0 0.0
    %508 = vmatpush1.msra.mxu0 %v470
    %509 = vmatprep.subr.mxu0 0.0
    %510 = vmatpush1.msra.mxu0 %v471
    %511 = vmatprep.subr.mxu0 0.0
    %512 = vmatpush1.msra.mxu0 %v472
    %513 = vmatprep.subr.mxu0 0.0
    %514 = vmatpush1.msra.mxu0 0.0
    %515 = vmatprep.subr.mxu0 0.0
    %516 = vmatpush1.msra.mxu0 0.0
    %517 = vmatprep.subr.mxu0 0.0
    %518 = vmatpush1.msra.mxu0 0.0
    %519 = vmatprep.subr.mxu0 0.0
    %520 = vmatpush1.msra.mxu0 0.0
    %521 = vmatprep.subr.mxu0 0.0
    %522 = vmatpush1.msra.mxu0 0.0
    %523 = vmatprep.subr.mxu0 0.0
    %524 = vmatpush1.msra.mxu0 0.0
    %525 = vmatprep.subr.mxu0 0.0
    %526 = vmatpush1.msra.mxu0 0.0
    %527 = vmatprep.subr.mxu0 0.0
    %528 = vmatpush1.msra.mxu0 0.0
    %529 = vmatprep.subr.mxu0 0.0
    %530 = vmatpush1.msra.mxu0 0.0
    %531 = vmatprep.subr.mxu0 0.0
    %532 = vmatpush1.msra.mxu0 0.0
    %533 = vmatprep.subr.mxu0 0.0
    %534 = vmatpush1.msra.mxu0 0.0
    %535 = vmatprep.subr.mxu0 0.0
    %536 = vmatpush1.msra.mxu0 0.0
    %537 = vmatprep.subr.mxu0 0.0
    %538 = vmatpush1.msra.mxu0 0.0
    %539 = vmatprep.subr.mxu0 0.0
    %540 = vmatpush1.msra.mxu0 0.0
    %541 = vmatprep.subr.mxu0 0.0
    %542 = vmatpush1.msra.mxu0 0.0
    %543 = vmatprep.subr.mxu0 0.0
    %544 = vmatpush1.msra.mxu0 0.0
    %545 = vmatprep.mubr.f32.mxu0 0.0
    %546 = vmatmul.mubr.f32.gmra.mrb[0].mxu0 %v455
    %v547 = vpop.f32.mrb[0].mxu0
    %v548 = vadd.f32 %v479, %v547
    %v549 = vpop.f32.mrb[0].mxu0
    %550 = vdwg.mxu0
    %v551 = vtanh.pop %v548
    %s552 = scalar_lea.vmem [#allocation2], 768
    %v553 = vld [vmem:[%s552] sm:$0xff]
    %v554 = vld [vmem:[%s552 + $0x8] sm:$0xff]
    %v555 = vld [vmem:[%s552 + $0x10] sm:$0xff]
    %v556 = vld [vmem:[%s552 + $0x18] sm:$0xff]
    %v557 = vld [vmem:[%s552 + $0x20] sm:$0xff]
    %v558 = vld [vmem:[%s552 + $0x28] sm:$0xff]
    %v559 = vld [vmem:[%s552 + $0x30] sm:$0xff]
    %v560 = vld [vmem:[%s552 + $0x38] sm:$0xff]
    %v561 = vld [vmem:[%s552 + $0x40] sm:$0xff]
    %v562 = vld [vmem:[%s552 + $0x48] sm:$0xff]
    %v563 = vld [vmem:[%s552 + $0x50] sm:$0xff]
    %v564 = vld [vmem:[%s552 + $0x58] sm:$0xff]
    %v565 = vld [vmem:[%s552 + $0x60] sm:$0xff]
    %v566 = vld [vmem:[%s552 + $0x68] sm:$0xff]
    %v567 = vld [vmem:[%s552 + $0x70] sm:$0xff]
    %v568 = vld [vmem:[%s552 + $0x78] sm:$0xff]
    %s569 = scalar_lea.vmem %s2, 6
    %v570 = vld [vmem:[%s569] sm:$0x1]
    %v572 = vlaneseq
    %v573 = vshrl.u32 %v572, 7
    %v574 = vsub.s32 0, %v573
    %v575 = vrot.slane %v570, %v574
    %577 = vmatprep.subr.mxu0 0.0
    %578 = vmatpush1.msra.mxu0 %v553
    %579 = vmatprep.subr.mxu0 0.0
    %580 = vmatpush1.msra.mxu0 %v554
    %581 = vmatprep.subr.mxu0 0.0
    %582 = vmatpush1.msra.mxu0 %v555
    %583 = vmatprep.subr.mxu0 0.0
    %584 = vmatpush1.msra.mxu0 %v556
    %585 = vmatprep.subr.mxu0 0.0
    %586 = vmatpush1.msra.mxu0 %v557
    %587 = vmatprep.subr.mxu0 0.0
    %588 = vmatpush1.msra.mxu0 %v558
    %589 = vmatprep.subr.mxu0 0.0
    %590 = vmatpush1.msra.mxu0 %v559
    %591 = vmatprep.subr.mxu0 0.0
    %592 = vmatpush1.msra.mxu0 %v560
    %593 = vmatprep.subr.mxu0 0.0
    %594 = vmatpush1.msra.mxu0 %v561
    %595 = vmatprep.subr.mxu0 0.0
    %596 = vmatpush1.msra.mxu0 %v562
    %597 = vmatprep.subr.mxu0 0.0
    %598 = vmatpush1.msra.mxu0 %v563
    %599 = vmatprep.subr.mxu0 0.0
    %600 = vmatpush1.msra.mxu0 %v564
    %601 = vmatprep.subr.mxu0 0.0
    %602 = vmatpush1.msra.mxu0 %v565
    %603 = vmatprep.subr.mxu0 0.0
    %604 = vmatpush1.msra.mxu0 %v566
    %605 = vmatprep.subr.mxu0 0.0
    %606 = vmatpush1.msra.mxu0 %v567
    %607 = vmatprep.subr.mxu0 0.0
    %608 = vmatpush1.msra.mxu0 %v568
    %609 = vmatprep.subr.mxu0 0.0
    %610 = vmatpush1.msra.mxu0 0.0
    %611 = vmatprep.subr.mxu0 0.0
    %612 = vmatpush1.msra.mxu0 0.0
    %613 = vmatprep.subr.mxu0 0.0
    %614 = vmatpush1.msra.mxu0 0.0
    %615 = vmatprep.subr.mxu0 0.0
    %616 = vmatpush1.msra.mxu0 0.0
    %617 = vmatprep.subr.mxu0 0.0
    %618 = vmatpush1.msra.mxu0 0.0
    %619 = vmatprep.subr.mxu0 0.0
    %620 = vmatpush1.msra.mxu0 0.0
    %621 = vmatprep.subr.mxu0 0.0
    %622 = vmatpush1.msra.mxu0 0.0
    %623 = vmatprep.subr.mxu0 0.0
    %624 = vmatpush1.msra.mxu0 0.0
    %625 = vmatprep.subr.mxu0 0.0
    %626 = vmatpush1.msra.mxu0 0.0
    %627 = vmatprep.subr.mxu0 0.0
    %628 = vmatpush1.msra.mxu0 0.0
    %629 = vmatprep.subr.mxu0 0.0
    %630 = vmatpush1.msra.mxu0 0.0
    %631 = vmatprep.subr.mxu0 0.0
    %632 = vmatpush1.msra.mxu0 0.0
    %633 = vmatprep.subr.mxu0 0.0
    %634 = vmatpush1.msra.mxu0 0.0
    %635 = vmatprep.subr.mxu0 0.0
    %636 = vmatpush1.msra.mxu0 0.0
    %637 = vmatprep.subr.mxu0 0.0
    %638 = vmatpush1.msra.mxu0 0.0
    %639 = vmatprep.subr.mxu0 0.0
    %640 = vmatpush1.msra.mxu0 0.0
    %641 = vmatprep.mubr.f32.mxu0 0.0
    %642 = vmatmul.mubr.f32.gmra.mrb[0].mxu0 %v551
    %v643 = vpop.f32.mrb[0].mxu0
    %v644 = vadd.f32 %v575, %v643
    %v645 = vpop.f32.mrb[0].mxu0
    %646 = vdwg.mxu0
    %v647 = vtanh.pop %v644
    %s648 = scalar_lea.vmem [#allocation2], 896
    %v649 = vld [vmem:[%s648] sm:$0xff]
    %v650 = vld [vmem:[%s648 + $0x8] sm:$0xff]
    %v651 = vld [vmem:[%s648 + $0x10] sm:$0xff]
    %v652 = vld [vmem:[%s648 + $0x18] sm:$0xff]
    %v653 = vld [vmem:[%s648 + $0x20] sm:$0xff]
    %v654 = vld [vmem:[%s648 + $0x28] sm:$0xff]
    %v655 = vld [vmem:[%s648 + $0x30] sm:$0xff]
    %v656 = vld [vmem:[%s648 + $0x38] sm:$0xff]
    %v657 = vld [vmem:[%s648 + $0x40] sm:$0xff]
    %v658 = vld [vmem:[%s648 + $0x48] sm:$0xff]
    %v659 = vld [vmem:[%s648 + $0x50] sm:$0xff]
    %v660 = vld [vmem:[%s648 + $0x58] sm:$0xff]
    %v661 = vld [vmem:[%s648 + $0x60] sm:$0xff]
    %v662 = vld [vmem:[%s648 + $0x68] sm:$0xff]
    %v663 = vld [vmem:[%s648 + $0x70] sm:$0xff]
    %v664 = vld [vmem:[%s648 + $0x78] sm:$0xff]
    %s665 = scalar_lea.vmem %s2, 7
    %v666 = vld [vmem:[%s665] sm:$0x1]
    %v668 = vlaneseq
    %v669 = vshrl.u32 %v668, 7
    %v670 = vsub.s32 0, %v669
    %v671 = vrot.slane %v666, %v670
    %673 = vmatprep.subr.mxu0 0.0
    %674 = vmatpush1.msra.mxu0 %v649
    %675 = vmatprep.subr.mxu0 0.0
    %676 = vmatpush1.msra.mxu0 %v650
    %677 = vmatprep.subr.mxu0 0.0
    %678 = vmatpush1.msra.mxu0 %v651
    %679 = vmatprep.subr.mxu0 0.0
    %680 = vmatpush1.msra.mxu0 %v652
    %681 = vmatprep.subr.mxu0 0.0
    %682 = vmatpush1.msra.mxu0 %v653
    %683 = vmatprep.subr.mxu0 0.0
    %684 = vmatpush1.msra.mxu0 %v654
    %685 = vmatprep.subr.mxu0 0.0
    %686 = vmatpush1.msra.mxu0 %v655
    %687 = vmatprep.subr.mxu0 0.0
    %688 = vmatpush1.msra.mxu0 %v656
    %689 = vmatprep.subr.mxu0 0.0
    %690 = vmatpush1.msra.mxu0 %v657
    %691 = vmatprep.subr.mxu0 0.0
    %692 = vmatpush1.msra.mxu0 %v658
    %693 = vmatprep.subr.mxu0 0.0
    %694 = vmatpush1.msra.mxu0 %v659
    %695 = vmatprep.subr.mxu0 0.0
    %696 = vmatpush1.msra.mxu0 %v660
    %697 = vmatprep.subr.mxu0 0.0
    %698 = vmatpush1.msra.mxu0 %v661
    %699 = vmatprep.subr.mxu0 0.0
    %700 = vmatpush1.msra.mxu0 %v662
    %701 = vmatprep.subr.mxu0 0.0
    %702 = vmatpush1.msra.mxu0 %v663
    %703 = vmatprep.subr.mxu0 0.0
    %704 = vmatpush1.msra.mxu0 %v664
    %705 = vmatprep.subr.mxu0 0.0
    %706 = vmatpush1.msra.mxu0 0.0
    %707 = vmatprep.subr.mxu0 0.0
    %708 = vmatpush1.msra.mxu0 0.0
    %709 = vmatprep.subr.mxu0 0.0
    %710 = vmatpush1.msra.mxu0 0.0
    %711 = vmatprep.subr.mxu0 0.0
    %712 = vmatpush1.msra.mxu0 0.0
    %713 = vmatprep.subr.mxu0 0.0
    %714 = vmatpush1.msra.mxu0 0.0
    %715 = vmatprep.subr.mxu0 0.0
    %716 = vmatpush1.msra.mxu0 0.0
    %717 = vmatprep.subr.mxu0 0.0
    %718 = vmatpush1.msra.mxu0 0.0
    %719 = vmatprep.subr.mxu0 0.0
    %720 = vmatpush1.msra.mxu0 0.0
    %721 = vmatprep.subr.mxu0 0.0
    %722 = vmatpush1.msra.mxu0 0.0
    %723 = vmatprep.subr.mxu0 0.0
    %724 = vmatpush1.msra.mxu0 0.0
    %725 = vmatprep.subr.mxu0 0.0
    %726 = vmatpush1.msra.mxu0 0.0
    %727 = vmatprep.subr.mxu0 0.0
    %728 = vmatpush1.msra.mxu0 0.0
    %729 = vmatprep.subr.mxu0 0.0
    %730 = vmatpush1.msra.mxu0 0.0
    %731 = vmatprep.subr.mxu0 0.0
    %732 = vmatpush1.msra.mxu0 0.0
    %733 = vmatprep.subr.mxu0 0.0
    %734 = vmatpush1.msra.mxu0 0.0
    %735 = vmatprep.subr.mxu0 0.0
    %736 = vmatpush1.msra.mxu0 0.0
    %737 = vmatprep.mubr.f32.mxu0 0.0
    %738 = vmatmul.mubr.f32.gmra.mrb[0].mxu0 %v647
    %v739 = vpop.f32.mrb[0].mxu0
    %v740 = vadd.f32 %v671, %v739
    %v741 = vpop.f32.mrb[0].mxu0
    %742 = vdwg.mxu0
    %v743 = vtanh.pop %v740
    %s744 = scalar_lea.vmem [#allocation2], 1024
    %v745 = vld [vmem:[%s744] sm:$0xff]
    %v746 = vld [vmem:[%s744 + $0x8] sm:$0xff]
    %v747 = vld [vmem:[%s744 + $0x10] sm:$0xff]
    %v748 = vld [vmem:[%s744 + $0x18] sm:$0xff]
    %v749 = vld [vmem:[%s744 + $0x20] sm:$0xff]
    %v750 = vld [vmem:[%s744 + $0x28] sm:$0xff]
    %v751 = vld [vmem:[%s744 + $0x30] sm:$0xff]
    %v752 = vld [vmem:[%s744 + $0x38] sm:$0xff]
    %v753 = vld [vmem:[%s744 + $0x40] sm:$0xff]
    %v754 = vld [vmem:[%s744 + $0x48] sm:$0xff]
    %v755 = vld [vmem:[%s744 + $0x50] sm:$0xff]
    %v756 = vld [vmem:[%s744 + $0x58] sm:$0xff]
    %v757 = vld [vmem:[%s744 + $0x60] sm:$0xff]
    %v758 = vld [vmem:[%s744 + $0x68] sm:$0xff]
    %v759 = vld [vmem:[%s744 + $0x70] sm:$0xff]
    %v760 = vld [vmem:[%s744 + $0x78] sm:$0xff]
    %s761 = scalar_lea.vmem %s2, 8
    %v762 = vld [vmem:[%s761] sm:$0x1]
    %v764 = vlaneseq
    %v765 = vshrl.u32 %v764, 7
    %v766 = vsub.s32 0, %v765
    %v767 = vrot.slane %v762, %v766
    %769 = vmatprep.subr.mxu0 0.0
    %770 = vmatpush1.msra.mxu0 %v745
    %771 = vmatprep.subr.mxu0 0.0
    %772 = vmatpush1.msra.mxu0 %v746
    %773 = vmatprep.subr.mxu0 0.0
    %774 = vmatpush1.msra.mxu0 %v747
    %775 = vmatprep.subr.mxu0 0.0
    %776 = vmatpush1.msra.mxu0 %v748
    %777 = vmatprep.subr.mxu0 0.0
    %778 = vmatpush1.msra.mxu0 %v749
    %779 = vmatprep.subr.mxu0 0.0
    %780 = vmatpush1.msra.mxu0 %v750
    %781 = vmatprep.subr.mxu0 0.0
    %782 = vmatpush1.msra.mxu0 %v751
    %783 = vmatprep.subr.mxu0 0.0
    %784 = vmatpush1.msra.mxu0 %v752
    %785 = vmatprep.subr.mxu0 0.0
    %786 = vmatpush1.msra.mxu0 %v753
    %787 = vmatprep.subr.mxu0 0.0
    %788 = vmatpush1.msra.mxu0 %v754
    %789 = vmatprep.subr.mxu0 0.0
    %790 = vmatpush1.msra.mxu0 %v755
    %791 = vmatprep.subr.mxu0 0.0
    %792 = vmatpush1.msra.mxu0 %v756
    %793 = vmatprep.subr.mxu0 0.0
    %794 = vmatpush1.msra.mxu0 %v757
    %795 = vmatprep.subr.mxu0 0.0
    %796 = vmatpush1.msra.mxu0 %v758
    %797 = vmatprep.subr.mxu0 0.0
    %798 = vmatpush1.msra.mxu0 %v759
    %799 = vmatprep.subr.mxu0 0.0
    %800 = vmatpush1.msra.mxu0 %v760
    %801 = vmatprep.subr.mxu0 0.0
    %802 = vmatpush1.msra.mxu0 0.0
    %803 = vmatprep.subr.mxu0 0.0
    %804 = vmatpush1.msra.mxu0 0.0
    %805 = vmatprep.subr.mxu0 0.0
    %806 = vmatpush1.msra.mxu0 0.0
    %807 = vmatprep.subr.mxu0 0.0
    %808 = vmatpush1.msra.mxu0 0.0
    %809 = vmatprep.subr.mxu0 0.0
    %810 = vmatpush1.msra.mxu0 0.0
    %811 = vmatprep.subr.mxu0 0.0
    %812 = vmatpush1.msra.mxu0 0.0
    %813 = vmatprep.subr.mxu0 0.0
    %814 = vmatpush1.msra.mxu0 0.0
    %815 = vmatprep.subr.mxu0 0.0
    %816 = vmatpush1.msra.mxu0 0.0
    %817 = vmatprep.subr.mxu0 0.0
    %818 = vmatpush1.msra.mxu0 0.0
    %819 = vmatprep.subr.mxu0 0.0
    %820 = vmatpush1.msra.mxu0 0.0
    %821 = vmatprep.subr.mxu0 0.0
    %822 = vmatpush1.msra.mxu0 0.0
    %823 = vmatprep.subr.mxu0 0.0
    %824 = vmatpush1.msra.mxu0 0.0
    %825 = vmatprep.subr.mxu0 0.0
    %826 = vmatpush1.msra.mxu0 0.0
    %827 = vmatprep.subr.mxu0 0.0
    %828 = vmatpush1.msra.mxu0 0.0
    %829 = vmatprep.subr.mxu0 0.0
    %830 = vmatpush1.msra.mxu0 0.0
    %831 = vmatprep.subr.mxu0 0.0
    %832 = vmatpush1.msra.mxu0 0.0
    %833 = vmatprep.mubr.f32.mxu0 0.0
    %834 = vmatmul.mubr.f32.gmra.mrb[0].mxu0 %v743
    %v835 = vpop.f32.mrb[0].mxu0
    %v836 = vadd.f32 %v767, %v835
    %v837 = vpop.f32.mrb[0].mxu0
    %838 = vdwg.mxu0
    %v839 = vtanh.pop %v836
    %s840 = scalar_lea.vmem [#allocation2], 1152
    %v841 = vld [vmem:[%s840] sm:$0xff]
    %v842 = vld [vmem:[%s840 + $0x8] sm:$0xff]
    %v843 = vld [vmem:[%s840 + $0x10] sm:$0xff]
    %v844 = vld [vmem:[%s840 + $0x18] sm:$0xff]
    %v845 = vld [vmem:[%s840 + $0x20] sm:$0xff]
    %v846 = vld [vmem:[%s840 + $0x28] sm:$0xff]
    %v847 = vld [vmem:[%s840 + $0x30] sm:$0xff]
    %v848 = vld [vmem:[%s840 + $0x38] sm:$0xff]
    %v849 = vld [vmem:[%s840 + $0x40] sm:$0xff]
    %v850 = vld [vmem:[%s840 + $0x48] sm:$0xff]
    %v851 = vld [vmem:[%s840 + $0x50] sm:$0xff]
    %v852 = vld [vmem:[%s840 + $0x58] sm:$0xff]
    %v853 = vld [vmem:[%s840 + $0x60] sm:$0xff]
    %v854 = vld [vmem:[%s840 + $0x68] sm:$0xff]
    %v855 = vld [vmem:[%s840 + $0x70] sm:$0xff]
    %v856 = vld [vmem:[%s840 + $0x78] sm:$0xff]
    %s857 = scalar_lea.vmem %s2, 9
    %v858 = vld [vmem:[%s857] sm:$0x1]
    %v860 = vlaneseq
    %v861 = vshrl.u32 %v860, 7
    %v862 = vsub.s32 0, %v861
    %v863 = vrot.slane %v858, %v862
    %865 = vmatprep.subr.mxu0 0.0
    %866 = vmatpush1.msra.mxu0 %v841
    %867 = vmatprep.subr.mxu0 0.0
    %868 = vmatpush1.msra.mxu0 %v842
    %869 = vmatprep.subr.mxu0 0.0
    %870 = vmatpush1.msra.mxu0 %v843
    %871 = vmatprep.subr.mxu0 0.0
    %872 = vmatpush1.msra.mxu0 %v844
    %873 = vmatprep.subr.mxu0 0.0
    %874 = vmatpush1.msra.mxu0 %v845
    %875 = vmatprep.subr.mxu0 0.0
    %876 = vmatpush1.msra.mxu0 %v846
    %877 = vmatprep.subr.mxu0 0.0
    %878 = vmatpush1.msra.mxu0 %v847
    %879 = vmatprep.subr.mxu0 0.0
    %880 = vmatpush1.msra.mxu0 %v848
    %881 = vmatprep.subr.mxu0 0.0
    %882 = vmatpush1.msra.mxu0 %v849
    %883 = vmatprep.subr.mxu0 0.0
    %884 = vmatpush1.msra.mxu0 %v850
    %885 = vmatprep.subr.mxu0 0.0
    %886 = vmatpush1.msra.mxu0 %v851
    %887 = vmatprep.subr.mxu0 0.0
    %888 = vmatpush1.msra.mxu0 %v852
    %889 = vmatprep.subr.mxu0 0.0
    %890 = vmatpush1.msra.mxu0 %v853
    %891 = vmatprep.subr.mxu0 0.0
    %892 = vmatpush1.msra.mxu0 %v854
    %893 = vmatprep.subr.mxu0 0.0
    %894 = vmatpush1.msra.mxu0 %v855
    %895 = vmatprep.subr.mxu0 0.0
    %896 = vmatpush1.msra.mxu0 %v856
    %897 = vmatprep.subr.mxu0 0.0
    %898 = vmatpush1.msra.mxu0 0.0
    %899 = vmatprep.subr.mxu0 0.0
    %900 = vmatpush1.msra.mxu0 0.0
    %901 = vmatprep.subr.mxu0 0.0
    %902 = vmatpush1.msra.mxu0 0.0
    %903 = vmatprep.subr.mxu0 0.0
    %904 = vmatpush1.msra.mxu0 0.0
    %905 = vmatprep.subr.mxu0 0.0
    %906 = vmatpush1.msra.mxu0 0.0
    %907 = vmatprep.subr.mxu0 0.0
    %908 = vmatpush1.msra.mxu0 0.0
    %909 = vmatprep.subr.mxu0 0.0
    %910 = vmatpush1.msra.mxu0 0.0
    %911 = vmatprep.subr.mxu0 0.0
    %912 = vmatpush1.msra.mxu0 0.0
    %913 = vmatprep.subr.mxu0 0.0
    %914 = vmatpush1.msra.mxu0 0.0
    %915 = vmatprep.subr.mxu0 0.0
    %916 = vmatpush1.msra.mxu0 0.0
    %917 = vmatprep.subr.mxu0 0.0
    %918 = vmatpush1.msra.mxu0 0.0
    %919 = vmatprep.subr.mxu0 0.0
    %920 = vmatpush1.msra.mxu0 0.0
    %921 = vmatprep.subr.mxu0 0.0
    %922 = vmatpush1.msra.mxu0 0.0
    %923 = vmatprep.subr.mxu0 0.0
    %924 = vmatpush1.msra.mxu0 0.0
    %925 = vmatprep.subr.mxu0 0.0
    %926 = vmatpush1.msra.mxu0 0.0
    %927 = vmatprep.subr.mxu0 0.0
    %928 = vmatpush1.msra.mxu0 0.0
    %929 = vmatprep.mubr.f32.mxu0 0.0
    %930 = vmatmul.mubr.f32.gmra.mrb[0].mxu0 %v839
    %v931 = vpop.f32.mrb[0].mxu0
    %v932 = vadd.f32 %v863, %v931
    %v933 = vpop.f32.mrb[0].mxu0
    %934 = vdwg.mxu0
    %v935 = vtanh.pop %v932
    %s936 = scalar_lea.vmem [#allocation2], 1280
    %v937 = vld [vmem:[%s936] sm:$0xff]
    %v938 = vld [vmem:[%s936 + $0x8] sm:$0xff]
    %v939 = vld [vmem:[%s936 + $0x10] sm:$0xff]
    %v940 = vld [vmem:[%s936 + $0x18] sm:$0xff]
    %v941 = vld [vmem:[%s936 + $0x20] sm:$0xff]
    %v942 = vld [vmem:[%s936 + $0x28] sm:$0xff]
    %v943 = vld [vmem:[%s936 + $0x30] sm:$0xff]
    %v944 = vld [vmem:[%s936 + $0x38] sm:$0xff]
    %v945 = vld [vmem:[%s936 + $0x40] sm:$0xff]
    %v946 = vld [vmem:[%s936 + $0x48] sm:$0xff]
    %v947 = vld [vmem:[%s936 + $0x50] sm:$0xff]
    %v948 = vld [vmem:[%s936 + $0x58] sm:$0xff]
    %v949 = vld [vmem:[%s936 + $0x60] sm:$0xff]
    %v950 = vld [vmem:[%s936 + $0x68] sm:$0xff]
    %v951 = vld [vmem:[%s936 + $0x70] sm:$0xff]
    %v952 = vld [vmem:[%s936 + $0x78] sm:$0xff]
    %s953 = scalar_lea.vmem %s2, 10
    %v954 = vld [vmem:[%s953] sm:$0x1]
    %v956 = vlaneseq
    %v957 = vshrl.u32 %v956, 7
    %v958 = vsub.s32 0, %v957
    %v959 = vrot.slane %v954, %v958
    %961 = vmatprep.subr.mxu0 0.0
    %962 = vmatpush1.msra.mxu0 %v937
    %963 = vmatprep.subr.mxu0 0.0
    %964 = vmatpush1.msra.mxu0 %v938
    %965 = vmatprep.subr.mxu0 0.0
    %966 = vmatpush1.msra.mxu0 %v939
    %967 = vmatprep.subr.mxu0 0.0
    %968 = vmatpush1.msra.mxu0 %v940
    %969 = vmatprep.subr.mxu0 0.0
    %970 = vmatpush1.msra.mxu0 %v941
    %971 = vmatprep.subr.mxu0 0.0
    %972 = vmatpush1.msra.mxu0 %v942
    %973 = vmatprep.subr.mxu0 0.0
    %974 = vmatpush1.msra.mxu0 %v943
    %975 = vmatprep.subr.mxu0 0.0
    %976 = vmatpush1.msra.mxu0 %v944
    %977 = vmatprep.subr.mxu0 0.0
    %978 = vmatpush1.msra.mxu0 %v945
    %979 = vmatprep.subr.mxu0 0.0
    %980 = vmatpush1.msra.mxu0 %v946
    %981 = vmatprep.subr.mxu0 0.0
    %982 = vmatpush1.msra.mxu0 %v947
    %983 = vmatprep.subr.mxu0 0.0
    %984 = vmatpush1.msra.mxu0 %v948
    %985 = vmatprep.subr.mxu0 0.0
    %986 = vmatpush1.msra.mxu0 %v949
    %987 = vmatprep.subr.mxu0 0.0
    %988 = vmatpush1.msra.mxu0 %v950
    %989 = vmatprep.subr.mxu0 0.0
    %990 = vmatpush1.msra.mxu0 %v951
    %991 = vmatprep.subr.mxu0 0.0
    %992 = vmatpush1.msra.mxu0 %v952
    %993 = vmatprep.subr.mxu0 0.0
    %994 = vmatpush1.msra.mxu0 0.0
    %995 = vmatprep.subr.mxu0 0.0
    %996 = vmatpush1.msra.mxu0 0.0
    %997 = vmatprep.subr.mxu0 0.0
    %998 = vmatpush1.msra.mxu0 0.0
    %999 = vmatprep.subr.mxu0 0.0
    %1000 = vmatpush1.msra.mxu0 0.0
    %1001 = vmatprep.subr.mxu0 0.0
    %1002 = vmatpush1.msra.mxu0 0.0
    %1003 = vmatprep.subr.mxu0 0.0
    %1004 = vmatpush1.msra.mxu0 0.0
    %1005 = vmatprep.subr.mxu0 0.0
    %1006 = vmatpush1.msra.mxu0 0.0
    %1007 = vmatprep.subr.mxu0 0.0
    %1008 = vmatpush1.msra.mxu0 0.0
    %1009 = vmatprep.subr.mxu0 0.0
    %1010 = vmatpush1.msra.mxu0 0.0
    %1011 = vmatprep.subr.mxu0 0.0
    %1012 = vmatpush1.msra.mxu0 0.0
    %1013 = vmatprep.subr.mxu0 0.0
    %1014 = vmatpush1.msra.mxu0 0.0
    %1015 = vmatprep.subr.mxu0 0.0
    %1016 = vmatpush1.msra.mxu0 0.0
    %1017 = vmatprep.subr.mxu0 0.0
    %1018 = vmatpush1.msra.mxu0 0.0
    %1019 = vmatprep.subr.mxu0 0.0
    %1020 = vmatpush1.msra.mxu0 0.0
    %1021 = vmatprep.subr.mxu0 0.0
    %1022 = vmatpush1.msra.mxu0 0.0
    %1023 = vmatprep.subr.mxu0 0.0
    %1024 = vmatpush1.msra.mxu0 0.0
    %1025 = vmatprep.mubr.f32.mxu0 0.0
    %1026 = vmatmul.mubr.f32.gmra.mrb[0].mxu0 %v935
    %v1027 = vpop.f32.mrb[0].mxu0
    %v1028 = vadd.f32 %v959, %v1027
    %v1029 = vpop.f32.mrb[0].mxu0
    %1030 = vdwg.mxu0
    %1031 = vst [vmem:[#allocation5] sm:$0xff] %v1028
    // Predicated region
    $region18: #{tpu_custom_call.1} parent=1 // pred_check
      _
    $region19: #{tpu_custom_call.1} parent=1 // pred_check_branch
      %1033 = sbr.rel (0) target = $region21
    $region20: #{tpu_custom_call.1} parent=1 // pred_region
      %s1035 = ssub.s32 128, 128
      %1036 = vsyncadd [#allocation4], %s1035
      %s1038 = sshll.u32 [#allocation5], 4
      %s1039 = int_to_ptr.vmem [resolvable:$true] %s1038
      %1041 = dma.vmem_to_hbm [thread:$0]  %s1039, 128, %s3, [#allocation4]
    $region21: #{tpu_custom_call.1} parent=1 // pred_fallthru
      _
    // Predicated region
    $region22: #{tpu_custom_call.1} parent=1 // pred_check
      _
    $region23: #{tpu_custom_call.1} parent=1 // pred_check_branch
      %1043 = sbr.rel (0) target = $region25
    $region24: #{tpu_custom_call.1} parent=1 // pred_region
      %1044 = dma.done [#allocation4], 128
    $region25: #{tpu_custom_call.1} parent=1 // pred_fallthru
      _
    %1045 = vsyncpa [#allocation3], 1
    %1046 = vsyncpa [#allocation4], 1

</llo_original>
